<compile_context>
chip_gen: v7x
topology: tpu7x:2x2x1
jax: 0.10.0
libtpu: 0.0.40
codegen_flags: <defaults>
</compile_context>

<pallas_src>
import numpy as np
import jax
import jax.numpy as jnp
from jax.experimental import pallas as pl
from jax.experimental.pallas import tpu as pltpu

F_DIM = 128     # node feature dim implied by Linear(256, H) on concat & Linear(128, 28)
GEOM = 8        # geometry columns appended per side: [x, y, z, |.|^2, 1, 0, 0, 0]


def _round_up(x, m):
    return ((x + m - 1) // m) * m


def _elu_ref(x):
    # exp only evaluated on the non-positive branch (no inf in the dead branch)
    return jnp.where(x > 0, x, jnp.exp(jnp.minimum(x, 0.0)) - 1.0)


def _default_bf16_elu():
    """bf16 ELU on v6e/v7x (bf16 EUP/VPU); keep f32 on v5-class chips."""
    try:
        kind = jax.devices()[0].device_kind.lower()
    except Exception:
        return True
    return not any(tag in kind for tag in ("v5e", "v5 lite", "v5lite"))


# --------------------------------------------------------------------------------------
# Pallas kernel: pair expansion + packed MDN heads + fused pairwise distance
# --------------------------------------------------------------------------------------

def _make_pair_kernel(h_dim, g, geom_off, elu_in_bf16):
    def kernel(a_ref, bt_ref, whT_ref, bhT_ref, out_ref):
        a = a_ref[0]            # [tile_l, AUG] f32: [a_l | pad | ligand geom | 0]
        bt = bt_ref[0]          # [N_t,   AUG] f32: [bt_t | pad | 0 | target geom]
        tile_l, aug = a.shape
        n_t = bt.shape[0]
        tile_p = tile_l * n_t
        rows = whT_ref.shape[0]

        # Pair expansion via broadcast-add; the leading-dim collapse is layout-free.
        hf_aug = (a[:, None, :] + bt[None, :, :]).reshape(tile_p, aug)
        # Single transpose puts the pair axis on lanes for every op that follows.
        hT = jnp.transpose(hf_aug)                                   # [AUG, tile_p] f32

        # --- node-feature rows: ELU (Dropout = identity in eval) -> bf16 heads ---
        hfT = hT[:h_dim]                                             # [H, tile_p]
        if elu_in_bf16:
            hfT = hfT.astype(jnp.bfloat16)
        hfT = jnp.where(hfT > 0, hfT, jnp.exp(jnp.minimum(hfT, 0)) - 1)
        hfT = hfT.astype(jnp.bfloat16)

        # Packed heads (pi | sigma | mu | pad rows), lane-dense: [rows, tile_p] f32.
        z = jnp.dot(whT_ref[...], hfT,
                    preferred_element_type=jnp.float32) + bhT_ref[...]

        # Row-masked transforms (no lane slices / concatenates).
        rid = jax.lax.broadcasted_iota(jnp.int32, (rows, tile_p), 0)
        is_pi = rid < g
        is_sig = (rid >= g) & (rid < 2 * g)
        is_mu = (rid >= 2 * g) & (rid < 3 * g)
        is_dist = rid == 3 * g

        zs = jnp.where(is_pi, z, -jnp.inf)
        m = jnp.max(zs, axis=0, keepdims=True)                       # [1, tile_p]
        # one exp serves both the softmax numerator (pi rows) and ELU (other rows);
        # both arguments are <= 0 so nothing overflows.
        ex = jnp.exp(jnp.where(is_pi, z - m, jnp.minimum(z, 0.0)))
        num = jnp.where(is_pi, ex, 0.0)
        den = jnp.sum(num, axis=0, keepdims=True)
        pi = num * pl.reciprocal(den, approx=True)                   # ~1e-3 off exact norm
        eluz = jnp.where(z > 0, z, ex - 1.0)
        offs = jnp.where(is_sig, 1.1, jnp.where(is_mu, 1.0, 0.0))
        out = jnp.where(is_pi, pi, eluz + offs)

        # --- fused pairwise distance (one extra sublane row) ---
        # TODO(synk): reference computes distances in float64; TPU kernel uses float32.
        plT = hT[geom_off:geom_off + GEOM]                           # [8, tile_p]
        ptT = hT[geom_off + GEOM:geom_off + 2 * GEOM]                # [8, tile_p]
        d2 = jnp.maximum(jnp.sum(plT * ptT, axis=0, keepdims=True), 0.0)
        out = jnp.where(is_dist, jnp.sqrt(d2), out)

        out_ref[0] = out.astype(out_ref.dtype)                       # single dense bf16 store
    return kernel


def _pick_tile_l(n_l, n_t, rows, aug, batch, vmem_budget=12 * 1024 * 1024):
    """Largest ligand tile whose per-step live set fits the budget (v7x-safe),
    keeping the output block lane-aligned and >=2 parallel grid steps when possible."""
    def est(tl):
        tp = tl * n_t
        per_pair = aug * 4 * 2 + rows * 4 * 3 + rows * 2 * 2        # hf_aug + hT + z/out + 2x bf16 out
        return tp * per_pair + 2 * (tl + n_t) * aug * 4
    cands = [d for d in range(n_l, 0, -1)
             if n_l % d == 0
             and (d == n_l or d % 8 == 0)
             and (d == n_l or (d * n_t) % 128 == 0)]
    tile = cands[-1]
    for d in cands:
        if est(d) <= vmem_budget:
            tile = d
            break
    while batch * (n_l // tile) < 2:                                 # v7x: 2 TensorCores
        smaller = [d for d in cands if d < tile]
        if not smaller:
            break
        tile = smaller[0]
    return tile


def pair_heads(a_aug, bt_aug, whT, bhT, *, num_gauss, hidden, geom_off,
               tile_l=None, elu_in_bf16=None, out_dtype=jnp.bfloat16):
    """a_aug: [B, N_l, AUG] f32, bt_aug: [B, N_t, AUG] f32, whT: [ROWS, H] bf16,
    bhT: [ROWS, 1] f32.  Returns packed [B, ROWS, N_l*N_t] (pi|sigma|mu|dist|pad rows)."""
    B, N_l, AUG = a_aug.shape
    N_t = bt_aug.shape[1]
    rows = whT.shape[0]
    if elu_in_bf16 is None:
        elu_in_bf16 = _default_bf16_elu()
    if tile_l is None:
        tile_l = _pick_tile_l(N_l, N_t, rows, AUG, B)
    assert N_l % tile_l == 0, "N_l must be divisible by tile_l"
    tile_p = tile_l * N_t
    P = N_l * N_t

    kernel = _make_pair_kernel(hidden, num_gauss, geom_off, elu_in_bf16)
    return pl.pallas_call(
        kernel,
        out_shape=jax.ShapeDtypeStruct((B, rows, P), out_dtype),
        grid=(B, N_l // tile_l),
        in_specs=[
            pl.BlockSpec((1, tile_l, AUG), lambda b, li: (b, li, 0)),   # ligand tile
            pl.BlockSpec((1, N_t, AUG), lambda b, li: (b, 0, 0)),       # all targets (per batch)
            pl.BlockSpec((rows, hidden), lambda b, li: (0, 0)),         # packed head weights (bf16)
            pl.BlockSpec((rows, 1), lambda b, li: (0, 0)),              # packed head bias (f32)
        ],
        out_specs=pl.BlockSpec((1, rows, tile_p), lambda b, li: (b, 0, li)),
        compiler_params=pltpu.CompilerParams(
            dimension_semantics=("parallel", "parallel"),
            vmem_limit_bytes=32 * 1024 * 1024,
        ),
    )(a_aug, bt_aug, whT, bhT)


# --------------------------------------------------------------------------------------
# Host-side (XLA) preparation
# --------------------------------------------------------------------------------------

def build_pair_inputs(lx_d, tx_d, lpos_d, tpos_d, params):
    """Fold the eval-BN'd Linear(256, H) into per-node terms (one XLA matmul per side)
    and append geometry columns so the kernel's broadcast-add + transpose also yields the
    squared-distance ingredients.  lgeo . tgeo = |x|^2 + |y|^2 - 2 x.y = d^2."""
    w1l, w1t, b1 = params["w1l"], params["w1t"], params["b1"]
    H = w1l.shape[1]
    a = jnp.einsum("bnf,fh->bnh", lx_d, w1l) + b1            # [B, N_l, H] f32
    bt = jnp.einsum("bnf,fh->bnh", tx_d, w1t)                # [B, N_t, H] f32
    B, N_l = a.shape[:2]
    N_t = bt.shape[1]
    h16 = _round_up(H, 16)

    x2 = jnp.sum(lpos_d * lpos_d, axis=-1, keepdims=True)
    y2 = jnp.sum(tpos_d * tpos_d, axis=-1, keepdims=True)
    lgeo = jnp.concatenate(
        [lpos_d, x2, jnp.ones_like(x2), jnp.zeros((B, N_l, GEOM - 5), jnp.float32)], -1)
    tgeo = jnp.concatenate(
        [-2.0 * tpos_d, jnp.ones_like(y2), y2, jnp.zeros((B, N_t, GEOM - 5), jnp.float32)], -1)

    a_aug = jnp.concatenate(
        [a, jnp.zeros((B, N_l, h16 - H), jnp.float32), lgeo,
         jnp.zeros((B, N_l, GEOM), jnp.float32)], -1)                    # [B, N_l, h16+16]
    bt_aug = jnp.concatenate(
        [bt, jnp.zeros((B, N_t, h16 - H), jnp.float32),
         jnp.zeros((B, N_t, GEOM), jnp.float32), tgeo], -1)              # [B, N_t, h16+16]
    return a_aug, bt_aug, h16


def pack_head_weights(w_pi, b_pi, w_sig, b_sig, w_mu, b_mu):
    """Pack pi|sigma|mu head weights transposed, with one spare row for the fused
    distance and zero-padding to a sublane multiple.  Bias stays f32."""
    H, G = w_pi.shape
    rows = _round_up(3 * G + 1, 8)
    whead = jnp.concatenate([w_pi, w_sig, w_mu], axis=1)                 # [H, 3G]
    whT = jnp.zeros((rows, H), jnp.float32).at[:3 * G].set(whead.T).astype(jnp.bfloat16)
    bh = jnp.concatenate([b_pi, b_sig, b_mu], axis=1).reshape(-1)        # [3G]
    bhT = jnp.zeros((rows, 1), jnp.float32).at[:3 * G, 0].set(bh)
    return whT, bhT, rows


def to_dense_batch(x_flat, counts):
    """Pure-JAX equivalent of torch_geometric.utils.to_dense_batch (glue);
    pads the node axis to a multiple of 8 so tiles stay sublane-aligned."""
    B = len(counts)
    N = _round_up(max(counts), 8)
    D = x_flat.shape[1]
    dense = jnp.zeros((B, N, D), x_flat.dtype)
    mask = np.zeros((B, N), dtype=bool)
    off = 0
    for i, c in enumerate(counts):
        dense = dense.at[i, :c, :].set(x_flat[off:off + c])
        mask[i, :c] = True
        off += c
    return dense, mask


if __name__ == "__main__":
    key = jax.random.PRNGKey(0)
    ks = jax.random.split(key, 16)

    B = 2
    HIDDEN = 32
    N_GAUSS = 8
    l_counts = [29, 32]      # ligand nodes per graph
    t_counts = [8, 6]        # target nodes per graph
    total_l, total_t = sum(l_counts), sum(t_counts)

    # TODO(synk): ligand_model / target_model (TargetNet: node/edge encoders, MetaLayer
    # scatter_mean message passing, 20 ResBlocks) are external GNN encoder submodules;
    # their outputs (node features, positions, batch assignment) are taken as inputs.
    h_l_x = jax.random.normal(ks[0], (total_l, F_DIM), jnp.float32)
    h_t_x = jax.random.normal(ks[1], (total_t, F_DIM), jnp.float32)
    h_l_pos = jax.random.uniform(ks[2], (total_l, 3), jnp.float32, 0.0, 10.0)
    h_t_pos = jax.random.uniform(ks[3], (total_t, 3), jnp.float32, 0.0, 10.0)
    edge_index = np.array([[0, 1, 2, 30, 31, 32],
                           [1, 2, 0, 31, 32, 33]], dtype=np.int32)

    # ---- deterministic parameter init (shapes from the module __init__) ----
    def lin_init(kw, kb, fan_in, fan_out):
        w = jax.random.normal(kw, (fan_in, fan_out), jnp.float32) / np.sqrt(fan_in)
        b = 0.01 * jax.random.normal(kb, (1, fan_out), jnp.float32)
        return w, b

    w_mlp, b_mlp = lin_init(ks[4], ks[5], 256, HIDDEN)          # MLP Linear(256, H)
    gamma = 1.0 + 0.1 * jax.random.normal(ks[6], (1, HIDDEN), jnp.float32)
    beta = 0.05 * jax.random.normal(ks[7], (1, HIDDEN), jnp.float32)
    run_mean = 0.1 * jax.random.normal(ks[8], (1, HIDDEN), jnp.float32)
    run_var = 1.0 + 0.1 * jax.random.uniform(ks[9], (1, HIDDEN), jnp.float32)
    eps = 1e-4
    bn_scale = gamma / jnp.sqrt(run_var + eps)                  # eval-mode BN (affine)
    bn_shift = beta - run_mean * bn_scale

    w_pi, b_pi = lin_init(ks[10], ks[11], HIDDEN, N_GAUSS)
    w_sig, b_sig = lin_init(ks[12], ks[13], HIDDEN, N_GAUSS)
    w_mu, b_mu = lin_init(ks[14], ks[15], HIDDEN, N_GAUSS)

    # Fold BN into the pair MLP (kept f32: the per-node projections run once in XLA).
    params = dict(w1l=w_mlp[:F_DIM] * bn_scale,
                  w1t=w_mlp[F_DIM:] * bn_scale,
                  b1=b_mlp * bn_scale + bn_shift)
    whT, bhT, ROWS = pack_head_weights(w_pi, b_pi, w_sig, b_sig, w_mu, b_mu)

    ks2 = jax.random.split(jax.random.PRNGKey(1), 4)
    w_atom, b_atom = lin_init(ks2[0], ks2[1], 128, 28)
    w_bond, b_bond = lin_init(ks2[2], ks2[3], 256, 6)

    # ---- to_dense_batch (glue) ----
    lx_d, l_mask = to_dense_batch(h_l_x, l_counts)
    tx_d, t_mask = to_dense_batch(h_t_x, t_counts)
    lpos_d, _ = to_dense_batch(h_l_pos, l_counts)
    tpos_d, _ = to_dense_batch(h_t_pos, t_counts)
    N_l, N_t = lx_d.shape[1], tx_d.shape[1]
    P = N_l * N_t

    # ---- Pallas hot path ----
    a_aug, bt_aug, geom_off = build_pair_inputs(lx_d, tx_d, lpos_d, tpos_d, params)
    packed_d = pair_heads(a_aug, bt_aug, whT, bhT,
                          num_gauss=N_GAUSS, hidden=HIDDEN, geom_off=geom_off)

    # C_mask gather (node counts are compile-time constants -> static indices)
    C_mask = l_mask[:, :, None] & t_mask[:, None, :]
    flat_idx = np.nonzero(C_mask.reshape(-1))[0]

    vals = jnp.transpose(packed_d, (0, 2, 1)).reshape(B * P, ROWS)
    vals = vals.astype(jnp.float32)[flat_idx]
    pi = vals[:, :N_GAUSS]
    sigma = vals[:, N_GAUSS:2 * N_GAUSS]
    mu = vals[:, 2 * N_GAUSS:3 * N_GAUSS]
    dist = vals[:, 3 * N_GAUSS:3 * N_GAUSS + 1]                  # .unsqueeze(1)
    C_batch = jnp.asarray(np.repeat(np.arange(B), P)[flat_idx], jnp.int32)

    # Tiny atom / bond linear heads: plain XLA (a pallas_call per head costs more
    # than the matmul itself at M=61 / M=6).
    atom_types = h_l_x @ w_atom + b_atom
    bond_in = jnp.concatenate([h_l_x[edge_index[0]], h_l_x[edge_index[1]]], axis=1)
    bond_types = bond_in @ w_bond + b_bond

    outs = (pi, sigma, mu, dist, atom_types, bond_types, C_batch)
    jax.block_until_ready(outs)

    # ---- pure-JAX f32 reference check (same eval-mode math, un-folded BN) ----
    Cfeat = jnp.concatenate([
        jnp.repeat(lx_d[:, :, None, :], N_t, axis=2),
        jnp.repeat(tx_d[:, None, :, :], N_l, axis=1)], axis=-1)   # [B,N_l,N_t,256]
    Cflat = Cfeat.reshape(-1, 256)[flat_idx]
    h = Cflat @ w_mlp + b_mlp
    h = _elu_ref(h * bn_scale + bn_shift)
    ref_pi = jax.nn.softmax(h @ w_pi + b_pi, axis=-1)
    ref_sig = _elu_ref(h @ w_sig + b_sig) + 1.1
    ref_mu = _elu_ref(h @ w_mu + b_mu) + 1.0
    d2 = (-2.0 * jnp.einsum('bld,btd->blt', lpos_d, tpos_d)
          + jnp.sum(tpos_d ** 2, -1)[:, None, :] + jnp.sum(lpos_d ** 2, -1)[:, :, None])
    ref_dist = jnp.sqrt(jnp.maximum(d2, 0.0)).reshape(-1)[flat_idx][:, None]
    ref_atom = h_l_x @ w_atom + b_atom
    ref_bond = bond_in @ w_bond + b_bond

    checks = [(pi, ref_pi, 3e-2), (sigma, ref_sig, 3e-2), (mu, ref_mu, 3e-2),
              (dist, ref_dist, 2e-2), (atom_types, ref_atom, 2e-2),
              (bond_types, ref_bond, 2e-2)]
    for got, ref, tol in checks:
        np.testing.assert_allclose(np.asarray(got), np.asarray(ref), rtol=tol, atol=tol)

    print("KERNEL_OK")
</pallas_src>

<mosaic_0001>
module attributes {stable_mosaic.version = 11 : i64} {
  func.func @kernel(%arg0: i32, %arg1: i32, %arg2: memref<1x32x48xf32, #tpu.memory_space<vmem>>, %arg3: memref<1x8x48xf32, #tpu.memory_space<vmem>>, %arg4: memref<32x32xbf16, #tpu.memory_space<vmem>>, %arg5: memref<32x1xf32, #tpu.memory_space<vmem>>, %arg6: memref<1x32x256xbf16, #tpu.memory_space<vmem>>) attributes {dimension_semantics = [#tpu.dimension_semantics<parallel>, #tpu.dimension_semantics<parallel>], iteration_bounds = array<i64: 2, 1>, scalar_prefetch = 0 : i64, scratch_operands = 0 : i64, tpu.core_type = #tpu.core_type<tc>, window_params = [{transform_indices = @transform_0, window_bounds = array<i64: 1, 32, 48>}, {transform_indices = @transform_1, window_bounds = array<i64: 1, 8, 48>}, {pipeline_mode = #tpu.pipeline_mode<synchronous>, transform_indices = @transform_2, window_bounds = array<i64: 32, 32>}, {pipeline_mode = #tpu.pipeline_mode<synchronous>, transform_indices = @transform_3, window_bounds = array<i64: 32, 1>}, {transform_indices = @transform_4, window_bounds = array<i64: 1, 32, 256>}]} {
    %c0 = arith.constant 0 : index
    %c0_0 = arith.constant 0 : index
    %c0_1 = arith.constant 0 : index
    %0 = vector.load %arg2[%c0, %c0_0, %c0_1] : memref<1x32x48xf32, #tpu.memory_space<vmem>>, vector<1x32x48xf32>
    %1 = vector.shape_cast %0 : vector<1x32x48xf32> to vector<32x48xf32>
    %c0_2 = arith.constant 0 : index
    %c0_3 = arith.constant 0 : index
    %c0_4 = arith.constant 0 : index
    %2 = vector.load %arg3[%c0_2, %c0_3, %c0_4] : memref<1x8x48xf32, #tpu.memory_space<vmem>>, vector<1x8x48xf32>
    %3 = vector.shape_cast %2 : vector<1x8x48xf32> to vector<8x48xf32>
    %4 = vector.shape_cast %1 : vector<32x48xf32> to vector<32x1x48xf32>
    %5 = vector.shape_cast %3 : vector<8x48xf32> to vector<1x8x48xf32>
    %6 = vector.broadcast %4 : vector<32x1x48xf32> to vector<32x8x48xf32>
    %7 = vector.broadcast %5 : vector<1x8x48xf32> to vector<32x8x48xf32>
    %8 = arith.addf %6, %7 : vector<32x8x48xf32>
    %9 = vector.shape_cast %8 : vector<32x8x48xf32> to vector<256x48xf32>
    %10 = tpu.transpose %9, [1, 0] : vector<256x48xf32> -> vector<48x256xf32>
    %11 = vector.extract_strided_slice %10 {offsets = [0, 0], sizes = [32, 256], strides = [1, 1]} : vector<48x256xf32> to vector<32x256xf32>
    %12 = arith.truncf %11 : vector<32x256xf32> to vector<32x256xbf16>
    %cst = arith.constant 0.000000e+00 : bf16
    %13 = vector.broadcast %cst : bf16 to vector<32x256xbf16>
    %14 = arith.cmpf ogt, %12, %13 : vector<32x256xbf16>
    %cst_5 = arith.constant 0.000000e+00 : bf16
    %15 = vector.broadcast %cst_5 : bf16 to vector<32x256xbf16>
    %16 = arith.minimumf %12, %15 : vector<32x256xbf16>
    %17 = math.exp %16 : vector<32x256xbf16>
    %cst_6 = arith.constant 1.000000e+00 : bf16
    %18 = vector.broadcast %cst_6 : bf16 to vector<32x256xbf16>
    %19 = arith.subf %17, %18 : vector<32x256xbf16>
    %20 = arith.select %14, %12, %19 : vector<32x256xi1>, vector<32x256xbf16>
    %c0_7 = arith.constant 0 : index
    %c0_8 = arith.constant 0 : index
    %21 = vector.load %arg4[%c0_7, %c0_8] : memref<32x32xbf16, #tpu.memory_space<vmem>>, vector<32x32xbf16>
    %cst_9 = arith.constant dense<0.000000e+00> : vector<32x256xf32>
    %22 = tpu.matmul %21, %20, %cst_9 {dimension_numbers = #tpu.dot_dimension_numbers<[1], [0], [0], [1], [0, 0, 1, 1], [], []>} : vector<32x32xbf16>, vector<32x256xbf16>, vector<32x256xf32> -> vector<32x256xf32>
    %c0_10 = arith.constant 0 : index
    %c0_11 = arith.constant 0 : index
    %23 = vector.load %arg5[%c0_10, %c0_11] : memref<32x1xf32, #tpu.memory_space<vmem>>, vector<32x1xf32>
    %24 = vector.broadcast %23 : vector<32x1xf32> to vector<32x256xf32>
    %25 = arith.addf %22, %24 : vector<32x256xf32>
    %26 = tpu.iota {dimensions = array<i32: 0>} : vector<32x256xi32>
    %c8_i32 = arith.constant 8 : i32
    %27 = vector.broadcast %c8_i32 : i32 to vector<32x256xi32>
    %28 = arith.cmpi slt, %26, %27 : vector<32x256xi32>
    %c8_i32_12 = arith.constant 8 : i32
    %29 = vector.broadcast %c8_i32_12 : i32 to vector<32x256xi32>
    %30 = arith.cmpi sge, %26, %29 : vector<32x256xi32>
    %c16_i32 = arith.constant 16 : i32
    %31 = vector.broadcast %c16_i32 : i32 to vector<32x256xi32>
    %32 = arith.cmpi slt, %26, %31 : vector<32x256xi32>
    %33 = arith.andi %30, %32 : vector<32x256xi1>
    %c16_i32_13 = arith.constant 16 : i32
    %34 = vector.broadcast %c16_i32_13 : i32 to vector<32x256xi32>
    %35 = arith.cmpi sge, %26, %34 : vector<32x256xi32>
    %c24_i32 = arith.constant 24 : i32
    %36 = vector.broadcast %c24_i32 : i32 to vector<32x256xi32>
    %37 = arith.cmpi slt, %26, %36 : vector<32x256xi32>
    %38 = arith.andi %35, %37 : vector<32x256xi1>
    %c24_i32_14 = arith.constant 24 : i32
    %39 = vector.broadcast %c24_i32_14 : i32 to vector<32x256xi32>
    %40 = arith.cmpi eq, %26, %39 : vector<32x256xi32>
    %cst_15 = arith.constant 0xFF800000 : f32
    %41 = vector.broadcast %cst_15 : f32 to vector<32x256xf32>
    %42 = arith.select %28, %25, %41 : vector<32x256xi1>, vector<32x256xf32>
    %cst_16 = arith.constant dense<0xFF800000> : vector<256xf32>
    %43 = vector.multi_reduction <maximumf>, %42, %cst_16 [0] : vector<32x256xf32> to vector<256xf32>
    %44 = vector.shape_cast %43 : vector<256xf32> to vector<1x256xf32>
    %45 = vector.broadcast %44 : vector<1x256xf32> to vector<32x256xf32>
    %46 = arith.subf %25, %45 : vector<32x256xf32>
    %cst_17 = arith.constant 0.000000e+00 : f32
    %47 = vector.broadcast %cst_17 : f32 to vector<32x256xf32>
    %48 = arith.minimumf %25, %47 : vector<32x256xf32>
    %49 = arith.select %28, %46, %48 : vector<32x256xi1>, vector<32x256xf32>
    %50 = math.exp %49 : vector<32x256xf32>
    %cst_18 = arith.constant 0.000000e+00 : f32
    %51 = vector.broadcast %cst_18 : f32 to vector<32x256xf32>
    %52 = arith.select %28, %50, %51 : vector<32x256xi1>, vector<32x256xf32>
    %cst_19 = arith.constant dense<0.000000e+00> : vector<256xf32>
    %53 = vector.multi_reduction <add>, %52, %cst_19 [0] : vector<32x256xf32> to vector<256xf32>
    %54 = vector.shape_cast %53 : vector<256xf32> to vector<1x256xf32>
    %55 = tpu.reciprocal %54 {approx = true} : vector<1x256xf32> -> vector<1x256xf32>
    %56 = vector.broadcast %55 : vector<1x256xf32> to vector<32x256xf32>
    %57 = arith.mulf %52, %56 : vector<32x256xf32>
    %cst_20 = arith.constant 0.000000e+00 : f32
    %58 = vector.broadcast %cst_20 : f32 to vector<32x256xf32>
    %59 = arith.cmpf ogt, %25, %58 : vector<32x256xf32>
    %cst_21 = arith.constant 1.000000e+00 : f32
    %60 = vector.broadcast %cst_21 : f32 to vector<32x256xf32>
    %61 = arith.subf %50, %60 : vector<32x256xf32>
    %62 = arith.select %59, %25, %61 : vector<32x256xi1>, vector<32x256xf32>
    %cst_22 = arith.constant 1.000000e+00 : f32
    %cst_23 = arith.constant 0.000000e+00 : f32
    %63 = vector.broadcast %cst_22 : f32 to vector<32x256xf32>
    %64 = vector.broadcast %cst_23 : f32 to vector<32x256xf32>
    %65 = arith.select %38, %63, %64 : vector<32x256xi1>, vector<32x256xf32>
    %cst_24 = arith.constant 1.100000e+00 : f32
    %66 = vector.broadcast %cst_24 : f32 to vector<32x256xf32>
    %67 = arith.select %33, %66, %65 : vector<32x256xi1>, vector<32x256xf32>
    %68 = arith.addf %62, %67 : vector<32x256xf32>
    %69 = arith.select %28, %57, %68 : vector<32x256xi1>, vector<32x256xf32>
    %70 = vector.extract_strided_slice %10 {offsets = [32, 0], sizes = [8, 256], strides = [1, 1]} : vector<48x256xf32> to vector<8x256xf32>
    %71 = vector.extract_strided_slice %10 {offsets = [40, 0], sizes = [8, 256], strides = [1, 1]} : vector<48x256xf32> to vector<8x256xf32>
    %72 = arith.mulf %70, %71 : vector<8x256xf32>
    %cst_25 = arith.constant dense<0.000000e+00> : vector<256xf32>
    %73 = vector.multi_reduction <add>, %72, %cst_25 [0] : vector<8x256xf32> to vector<256xf32>
    %74 = vector.shape_cast %73 : vector<256xf32> to vector<1x256xf32>
    %cst_26 = arith.constant 0.000000e+00 : f32
    %75 = vector.broadcast %cst_26 : f32 to vector<1x256xf32>
    %76 = arith.maximumf %74, %75 : vector<1x256xf32>
    %77 = math.sqrt %76 : vector<1x256xf32>
    %78 = vector.shape_cast %77 : vector<1x256xf32> to vector<1x256xf32>
    %79 = vector.broadcast %78 : vector<1x256xf32> to vector<32x256xf32>
    %80 = arith.select %40, %79, %69 : vector<32x256xi1>, vector<32x256xf32>
    %81 = arith.truncf %80 : vector<32x256xf32> to vector<32x256xbf16>
    %c0_27 = arith.constant 0 : index
    %c0_28 = arith.constant 0 : index
    %c0_29 = arith.constant 0 : index
    %82 = vector.load %arg6[%c0_27, %c0_28, %c0_29] : memref<1x32x256xbf16, #tpu.memory_space<vmem>>, vector<1x32x256xbf16>
    %83 = vector.shape_cast %82 : vector<1x32x256xbf16> to vector<32x256xbf16>
    %84 = vector.shape_cast %81 : vector<32x256xbf16> to vector<1x32x256xbf16>
    tpu.vector_store %arg6[%c0_27, %c0_28, %c0_29], %84 {strides = array<i32>} : memref<1x32x256xbf16, #tpu.memory_space<vmem>>, vector<1x32x256xbf16>,
    return
  }
  func.func @transform_0(%arg0: i32, %arg1: i32) -> (i32, i32, i32) {
    %c0_i32 = arith.constant 0 : i32
    %c0_i32_0 = arith.constant 0 : i32
    return %arg0, %arg1, %c0_i32 : i32, i32, i32
  }
  func.func @transform_1(%arg0: i32, %arg1: i32) -> (i32, i32, i32) {
    %c0_i32 = arith.constant 0 : i32
    %c0_i32_0 = arith.constant 0 : i32
    %c0_i32_1 = arith.constant 0 : i32
    return %arg0, %c0_i32, %c0_i32_0 : i32, i32, i32
  }
  func.func @transform_2(%arg0: i32, %arg1: i32) -> (i32, i32) {
    %c0_i32 = arith.constant 0 : i32
    %c0_i32_0 = arith.constant 0 : i32
    %c0_i32_1 = arith.constant 0 : i32
    return %c0_i32, %c0_i32_0 : i32, i32
  }
  func.func @transform_3(%arg0: i32, %arg1: i32) -> (i32, i32) {
    %c0_i32 = arith.constant 0 : i32
    %c0_i32_0 = arith.constant 0 : i32
    %c0_i32_1 = arith.constant 0 : i32
    return %c0_i32, %c0_i32_0 : i32, i32
  }
  func.func @transform_4(%arg0: i32, %arg1: i32) -> (i32, i32, i32) {
    %c0_i32 = arith.constant 0 : i32
    %c0_i32_0 = arith.constant 0 : i32
    return %arg0, %c0_i32, %arg1 : i32, i32, i32
  }
}

</mosaic_0001>

<llo_original>
// kernel: tpu_custom_call.1
$region0: #{tpu_custom_call.1}
  #allocation0 [shape = 'u32[]', space=smem, size = 0x4, offset = 0x4, fixed_abs, tag = 'smem constant byte address 0x4 - core index']
  #allocation1 [shape = 'u32[144,128]{1,0:T(1,128)}', space=vmem, size = 0x12000, scoped, tag = 'internal scratch']
  %s0 = inlined_call_operand.hbm [shape: f32[2,32,48], index: 0, kind: input, shape index: {}]
  %s1 = inlined_call_operand.vmem [shape: f32[2,8,48], index: 1, kind: input, shape index: {}]
  %s2 = inlined_call_operand.vmem [shape: bf16[32,32], index: 2, kind: input, shape index: {}]
  %s3 = inlined_call_operand.vmem [shape: f32[32,1], index: 3, kind: input, shape index: {}]
  %s4 = inlined_call_operand.hbm [shape: bf16[2,32,256], index: 4, kind: output, shape index: {}]
  %s5 = sld [smem:[#allocation0]]
  $region53: #{tpu_custom_call.1} parent=0
    _
  %s7 = ssub.s32 1, %s5
  %s8 = scalar_select 0, %s7, %s5
  $region1: #{tpu_custom_call.1} parent=0
    #allocation2 [shape = 'u8[32768]{0}', space=vmem, size = 0x8000, scoped, tag = 'input window, operand 0']
    #allocation3 [shape = 's32[2]{0}', space=sflag, size = 0x8, scoped, tag = 'scoped memory for tpu_custom_call.1']
    #allocation4 [shape = 's32[2]{0}', space=sflag, size = 0x8, scoped, tag = 'scoped memory for tpu_custom_call.1']
    #allocation5 [shape = 'u8[32768]{0}', space=vmem, size = 0x8000, scoped, tag = 'output window, operand 0']
    %9 = vsyncpa [#allocation3], 0
    %s10 = scalar_lea.sflag [#allocation3], 1
    %11 = vsyncpa %s10, 0
    %12 = vsyncpa [#allocation4], 0
    %s13 = scalar_lea.sflag [#allocation4], 1
    %14 = vsyncpa %s13, 0
    loop: start=0, step=1, limit=4
    $region2: #{tpu_custom_call.1} parent=1 // loop_pre_header
      _
    $region3: #{tpu_custom_call.1} parent=1 // loop_header
      %s16 = sphi 0, %s20
      %p17 = scmp.ge.s32.totalorder %s16, 4
      %s23 = sphi 0, %s35
      %s24 = sphi 0, %s31
      %s25 = sphi 0, %s23
      %s26 = sphi 0, %s24
      %s27 = sphi 0, %s25
      %s28 = sphi 0, %s26
      %s40 = sphi 0, %s42
      %s43 = sphi 0, %s40
      %s44 = sphi 0, %s43
      %s60 = sphi 0, %s44
      %s66 = sphi 0, %s68
      %s69 = sphi 0, %s66
      %s70 = sphi 0, %s69
      %s86 = sphi 0, %s70
      %s90 = sphi 0, %s90
      %s92 = sphi 0, %s90
      %s93 = sphi 0, %s92
      %s107 = sphi 0, %s93
      %s111 = sphi 0, %s111
      %s113 = sphi 0, %s111
      %s114 = sphi 0, %s113
      %s128 = sphi 0, %s114
      %s136 = sphi 0, %s138
      %s139 = sphi 0, %s136
      %s140 = sphi 0, %s139
      %s156 = sphi 0, %s140
    $region4: #{tpu_custom_call.1} parent=1 // loop_header_branch
      %19 = sbr.rel (%p17) target = $region8
    $region5: #{tpu_custom_call.1} parent=1 // loop_body
      %s21 = ssub.s32 %s16, 1
      %s22 = ssub.s32 %s16, 2
      %s29 = sadd.s32 1, %s24
      %p30 = scmp.ge.s32.totalorder %s29, 1
      %s31 = scalar_select %p30, 0, %s29
      %s32 = sadd.s32 1, %s23
      %s33 = scalar_select %p30, %s32, %s23
      %p34 = scmp.ge.s32.totalorder %s33, 2
      %s35 = scalar_select %p34, 0, %s33
      %s36 = ssub.s32 %s23, %s35
      %s37 = ssub.s32 %s24, %s31
      %s38 = sor.u32 %s36, %s37
      %p39 = scmp.eq.s32.totalorder %s38, 0
      %s41 = sadd.s32 %s40, 1
      %s42 = scalar_select %p39, %s40, %s41
      %p45 = pneg %p39
      %p46 = scmp.eq.s32.totalorder %s16, 1
      %p47 = por %p45, %p46
      %p48 = scmp.ne.s32.totalorder %s40, %s43
      %p49 = scmp.eq.s32.totalorder %s16, 0
      %p50 = por %p48, %p49
      %p51 = scmp.ne.s32.totalorder %s40, %s43
      %p52 = scmp.eq.s32.totalorder %s21, 1
      %p53 = por %p51, %p52
      %p54 = scmp.ne.s32.totalorder %s43, %s44
      %p55 = scmp.eq.s32.totalorder %s21, 0
      %p56 = por %p54, %p55
      %p57 = scmp.ne.s32.totalorder %s43, %s44
      %p58 = scmp.eq.s32.totalorder %s22, 1
      %p59 = por %p57, %p58
      %p61 = scmp.ne.s32.totalorder %s44, %s60
      %p62 = scmp.eq.s32.totalorder %s22, 0
      %p63 = por %p61, %p62
      %s64 = ssub.s32 %s23, %s35
      %p65 = scmp.eq.s32.totalorder %s64, 0
      %s67 = sadd.s32 %s66, 1
      %s68 = scalar_select %p65, %s66, %s67
      %p71 = pneg %p65
      %p72 = scmp.eq.s32.totalorder %s16, 1
      %p73 = por %p71, %p72
      %p74 = scmp.ne.s32.totalorder %s66, %s69
      %p75 = scmp.eq.s32.totalorder %s16, 0
      %p76 = por %p74, %p75
      %p77 = scmp.ne.s32.totalorder %s66, %s69
      %p78 = scmp.eq.s32.totalorder %s21, 1
      %p79 = por %p77, %p78
      %p80 = scmp.ne.s32.totalorder %s69, %s70
      %p81 = scmp.eq.s32.totalorder %s21, 0
      %p82 = por %p80, %p81
      %p83 = scmp.ne.s32.totalorder %s69, %s70
      %p84 = scmp.eq.s32.totalorder %s22, 1
      %p85 = por %p83, %p84
      %p87 = scmp.ne.s32.totalorder %s70, %s86
      %p88 = scmp.eq.s32.totalorder %s22, 0
      %p89 = por %p87, %p88
      %s91 = sadd.s32 %s90, 1
      %p94 = scmp.eq.s32.totalorder %s16, 1
      %p95 = scmp.ne.s32.totalorder %s90, %s92
      %p96 = scmp.eq.s32.totalorder %s16, 0
      %p97 = por %p95, %p96
      %p98 = scmp.ne.s32.totalorder %s90, %s92
      %p99 = scmp.eq.s32.totalorder %s21, 1
      %p100 = por %p98, %p99
      %p101 = scmp.ne.s32.totalorder %s92, %s93
      %p102 = scmp.eq.s32.totalorder %s21, 0
      %p103 = por %p101, %p102
      %p104 = scmp.ne.s32.totalorder %s92, %s93
      %p105 = scmp.eq.s32.totalorder %s22, 1
      %p106 = por %p104, %p105
      %p108 = scmp.ne.s32.totalorder %s93, %s107
      %p109 = scmp.eq.s32.totalorder %s22, 0
      %p110 = por %p108, %p109
      %s112 = sadd.s32 %s111, 1
      %p115 = scmp.eq.s32.totalorder %s16, 1
      %p116 = scmp.ne.s32.totalorder %s111, %s113
      %p117 = scmp.eq.s32.totalorder %s16, 0
      %p118 = por %p116, %p117
      %p119 = scmp.ne.s32.totalorder %s111, %s113
      %p120 = scmp.eq.s32.totalorder %s21, 1
      %p121 = por %p119, %p120
      %p122 = scmp.ne.s32.totalorder %s113, %s114
      %p123 = scmp.eq.s32.totalorder %s21, 0
      %p124 = por %p122, %p123
      %p125 = scmp.ne.s32.totalorder %s113, %s114
      %p126 = scmp.eq.s32.totalorder %s22, 1
      %p127 = por %p125, %p126
      %p129 = scmp.ne.s32.totalorder %s114, %s128
      %p130 = scmp.eq.s32.totalorder %s22, 0
      %p131 = por %p129, %p130
      %s132 = ssub.s32 %s23, %s35
      %s133 = ssub.s32 %s24, %s31
      %s134 = sor.u32 %s132, %s133
      %p135 = scmp.eq.s32.totalorder %s134, 0
      %s137 = sadd.s32 %s136, 1
      %s138 = scalar_select %p135, %s136, %s137
      %p141 = pneg %p135
      %p142 = scmp.eq.s32.totalorder %s16, 1
      %p143 = por %p141, %p142
      %p144 = scmp.ne.s32.totalorder %s136, %s139
      %p145 = scmp.eq.s32.totalorder %s16, 0
      %p146 = por %p144, %p145
      %p147 = scmp.ne.s32.totalorder %s136, %s139
      %p148 = scmp.eq.s32.totalorder %s21, 1
      %p149 = por %p147, %p148
      %p150 = scmp.ne.s32.totalorder %s139, %s140
      %p151 = scmp.eq.s32.totalorder %s21, 0
      %p152 = por %p150, %p151
      %p153 = scmp.ne.s32.totalorder %s139, %s140
      %p154 = scmp.eq.s32.totalorder %s22, 1
      %p155 = por %p153, %p154
      %p157 = scmp.ne.s32.totalorder %s140, %s156
      %p158 = scmp.eq.s32.totalorder %s22, 0
      %p159 = por %p157, %p158
      %p160 = scmp.le.s32.totalorder 1, %s16
      %p161 = scmp.lt.s32.totalorder %s16, 3
      %p162 = pnand %p160, %p161
      %p163 = pneg %p162
      // Predicated region
      $region9: #{tpu_custom_call.1} parent=5 // pred_check
        _
      $region10: #{tpu_custom_call.1} parent=5 // pred_check_branch
        %165 = sbr.rel (%p162) target = $region12
      $region11: #{tpu_custom_call.1} parent=5 // pred_region
        %s166 = ssub.s32 %s16, 1
        // Predicated region
        $region13: #{tpu_custom_call.1} parent=11 // pred_check
          %p167 = pneg %p103
        $region14: #{tpu_custom_call.1} parent=11 // pred_check_branch
          %169 = sbr.rel (%p167) target = $region16
        $region15: #{tpu_custom_call.1} parent=11 // pred_region
          _
        $region16: #{tpu_custom_call.1} parent=11 // pred_fallthru
          _
        // Predicated region
        $region17: #{tpu_custom_call.1} parent=11 // pred_check
          %p170 = pneg %p124
        $region18: #{tpu_custom_call.1} parent=11 // pred_check_branch
          %172 = sbr.rel (%p170) target = $region20
        $region19: #{tpu_custom_call.1} parent=11 // pred_region
          _
        $region20: #{tpu_custom_call.1} parent=11 // pred_fallthru
          _
      $region12: #{tpu_custom_call.1} parent=5 // pred_fallthru
        _
      %p173 = scmp.lt.s32.totalorder %s16, 2
      // Predicated region
      $region21: #{tpu_custom_call.1} parent=5 // pred_check
        %p174 = pneg %p173
      $region22: #{tpu_custom_call.1} parent=5 // pred_check_branch
        %176 = sbr.rel (%p174) target = $region24
      $region23: #{tpu_custom_call.1} parent=5 // pred_region
        // Predicated region
        $region25: #{tpu_custom_call.1} parent=23 // pred_check
          %p177 = pneg %p50
        $region26: #{tpu_custom_call.1} parent=23 // pred_check_branch
          %179 = sbr.rel (%p177) target = $region28
        $region27: #{tpu_custom_call.1} parent=23 // pred_region
          %s180 = sand.u32 %s40, 1
          %s181 = scalar_lea.sflag [#allocation3], %s180
          %s182 = sand.u32 %s40, 1
          %s183 = smul.addr %s182, 32
          %s184 = scalar_lea.vmem [#allocation2], %s183
          %s185 = smul.u32 4, %s24
          %s187 = ssub.s32 512, 512
          %188 = vsyncadd %s181, %s187
          %s189 = smul.addr %s23, 4
          %s190 = sadd.s32 %s185, %s189
          %s191 = smul.addr %s190, 128
          %s192 = scalar_lea.hbm %s0, %s191
          %s193 = sshll.u32 %s184, 4
          %s194 = int_to_ptr.vmem [resolvable:$true] %s193
          %199 = dma.hbm_to_vmem [thread:$0]  %s192, 512, %s194, %s181, 128, 128, 8
        $region28: #{tpu_custom_call.1} parent=23 // pred_fallthru
          _
        // Predicated region
        $region29: #{tpu_custom_call.1} parent=23 // pred_check
          %p200 = pneg %p76
        $region30: #{tpu_custom_call.1} parent=23 // pred_check_branch
          %202 = sbr.rel (%p200) target = $region32
        $region31: #{tpu_custom_call.1} parent=23 // pred_region
          %p203 = scmp.lt.s32.totalorder %s23, 1
          %s204 = scalar_select %p203, %s23, 1
          %s205 = smul.addr %s204, 8
          %s206 = scalar_lea.vmem %s1, %s205
        $region32: #{tpu_custom_call.1} parent=23 // pred_fallthru
          _
      $region24: #{tpu_custom_call.1} parent=5 // pred_fallthru
        _
      %p207 = scmp.le.s32.totalorder 1, %s16
      %p208 = scmp.lt.s32.totalorder %s16, 3
      %p209 = pnand %p207, %p208
      %p210 = pneg %p209
      // Predicated region
      $region33: #{tpu_custom_call.1} parent=5 // pred_check
        _
      $region34: #{tpu_custom_call.1} parent=5 // pred_check_branch
        %212 = sbr.rel (%p209) target = $region36
      $region35: #{tpu_custom_call.1} parent=5 // pred_region
        %s213 = ssub.s32 %s16, 1
        %s214 = sand.u32 %s43, 1
        %s215 = scalar_lea.sflag [#allocation3], %s214
        %s216 = sand.u32 %s43, 1
        %s217 = smul.addr %s216, 32
        %s218 = scalar_lea.vmem [#allocation2], %s217
        // Predicated region
        $region37: #{tpu_custom_call.1} parent=35 // pred_check
          %p219 = pneg %p56
        $region38: #{tpu_custom_call.1} parent=35 // pred_check_branch
          %221 = sbr.rel (%p219) target = $region40
        $region39: #{tpu_custom_call.1} parent=35 // pred_region
          %222 = dma.done %s215, 512
        $region40: #{tpu_custom_call.1} parent=35 // pred_fallthru
          _
        %s223 = sand.u32 %s43, 1
        %s224 = scalar_lea.sflag [#allocation3], %s223
        %s225 = sand.u32 %s43, 1
        %s226 = smul.addr %s225, 32
        %s227 = scalar_lea.vmem [#allocation2], %s226
        %p228 = pneg %p56
        %p229 = pneg %p53
        %p230 = scmp.lt.s32.totalorder %s25, 1
        %s231 = scalar_select %p230, %s25, 1
        %s232 = smul.addr %s231, 8
        %s233 = scalar_lea.vmem %s1, %s232
        %p234 = pneg %p82
        %p235 = pneg %p79
        %p236 = pneg %p103
        %p237 = pneg %p100
        %p238 = pneg %p124
        %p239 = pneg %p121
        %p240 = pneg %p152
        %p241 = pneg %p149
        %s242 = sand.u32 %s139, 1
        %s243 = scalar_lea.sflag [#allocation4], %s242
        %s244 = sand.u32 %s139, 1
        %s245 = smul.addr %s244, 32
        %s246 = scalar_lea.vmem [#allocation5], %s245
        %s247 = smul.u32 4, %s26
        %p248 = scmp.lt.s32.totalorder %s25, 1
        %s249 = scalar_select %p248, %s25, 1
        %s250 = smul.addr %s249, 8
        %s251 = scalar_lea.vmem %s1, %s250
        %s252 = smul.u32 2, %s26
        %v255 = vld [vmem:[%s218] sm:$0xff]
        %v256 = vld [vmem:[%s218 + $0x8] sm:$0xff]
        %v257 = vld [vmem:[%s218 + $0x10] sm:$0xff]
        %v258 = vld [vmem:[%s218 + $0x18] sm:$0xff]
        %v259 = vld [vmem:[%s251] sm:$0xff]
        %v264 = vcombine.high %v255, %v255
        %v266 = vunpack.c.l.s4 1966171168
        %v267 = vunpack.c.0.s8 %v266
        %v268 = vlaneseq
        %v269 = vshrl.u32 %v268, 7
        %v270 = vsub.s32 %v267, %v269
        %v271 = vrot.slane %v255, %v270
        %v273 = vunpack.c.l.s4 1966171168
        %v274 = vunpack.c.0.s8 %v273
        %v275 = vlaneseq
        %v276 = vshrl.u32 %v275, 7
        %v277 = vsub.s32 %v274, %v276
        %v278 = vrot.slane %v264, %v277
        %v279 = vcombine.high %v271, %v271
        %v280 = vcombine.high %v278, %v278
        %v282 = vunpack.c.l.s4 1966171168
        %v283 = vunpack.c.0.s8 %v282
        %v284 = vlaneseq
        %v285 = vshrl.u32 %v284, 7
        %v286 = vsub.s32 %v283, %v285
        %v287 = vrot.slane %v271, %v286
        %v289 = vunpack.c.l.s4 1966171168
        %v290 = vunpack.c.0.s8 %v289
        %v291 = vlaneseq
        %v292 = vshrl.u32 %v291, 7
        %v293 = vsub.s32 %v290, %v292
        %v294 = vrot.slane %v278, %v293
        %v296 = vunpack.c.l.s4 1966171168
        %v297 = vunpack.c.0.s8 %v296
        %v298 = vlaneseq
        %v299 = vshrl.u32 %v298, 7
        %v300 = vsub.s32 %v297, %v299
        %v301 = vrot.slane %v279, %v300
        %v303 = vunpack.c.l.s4 1966171168
        %v304 = vunpack.c.0.s8 %v303
        %v305 = vlaneseq
        %v306 = vshrl.u32 %v305, 7
        %v307 = vsub.s32 %v304, %v306
        %v308 = vrot.slane %v280, %v307
        %v309 = vcombine.high %v287, %v287
        %v310 = vcombine.high %v294, %v294
        %v311 = vcombine.high %v301, %v301
        %v312 = vcombine.high %v308, %v308
        %v313 = vcombine.high %v256, %v256
        %v315 = vunpack.c.l.s4 1966171168
        %v316 = vunpack.c.0.s8 %v315
        %v317 = vlaneseq
        %v318 = vshrl.u32 %v317, 7
        %v319 = vsub.s32 %v316, %v318
        %v320 = vrot.slane %v256, %v319
        %v322 = vunpack.c.l.s4 1966171168
        %v323 = vunpack.c.0.s8 %v322
        %v324 = vlaneseq
        %v325 = vshrl.u32 %v324, 7
        %v326 = vsub.s32 %v323, %v325
        %v327 = vrot.slane %v313, %v326
        %v328 = vcombine.high %v320, %v320
        %v329 = vcombine.high %v327, %v327
        %v331 = vunpack.c.l.s4 1966171168
        %v332 = vunpack.c.0.s8 %v331
        %v333 = vlaneseq
        %v334 = vshrl.u32 %v333, 7
        %v335 = vsub.s32 %v332, %v334
        %v336 = vrot.slane %v320, %v335
        %v338 = vunpack.c.l.s4 1966171168
        %v339 = vunpack.c.0.s8 %v338
        %v340 = vlaneseq
        %v341 = vshrl.u32 %v340, 7
        %v342 = vsub.s32 %v339, %v341
        %v343 = vrot.slane %v327, %v342
        %v345 = vunpack.c.l.s4 1966171168
        %v346 = vunpack.c.0.s8 %v345
        %v347 = vlaneseq
        %v348 = vshrl.u32 %v347, 7
        %v349 = vsub.s32 %v346, %v348
        %v350 = vrot.slane %v328, %v349
        %v352 = vunpack.c.l.s4 1966171168
        %v353 = vunpack.c.0.s8 %v352
        %v354 = vlaneseq
        %v355 = vshrl.u32 %v354, 7
        %v356 = vsub.s32 %v353, %v355
        %v357 = vrot.slane %v329, %v356
        %v358 = vcombine.high %v336, %v336
        %v359 = vcombine.high %v343, %v343
        %v360 = vcombine.high %v350, %v350
        %v361 = vcombine.high %v357, %v357
        %v362 = vcombine.high %v257, %v257
        %v364 = vunpack.c.l.s4 1966171168
        %v365 = vunpack.c.0.s8 %v364
        %v366 = vlaneseq
        %v367 = vshrl.u32 %v366, 7
        %v368 = vsub.s32 %v365, %v367
        %v369 = vrot.slane %v257, %v368
        %v371 = vunpack.c.l.s4 1966171168
        %v372 = vunpack.c.0.s8 %v371
        %v373 = vlaneseq
        %v374 = vshrl.u32 %v373, 7
        %v375 = vsub.s32 %v372, %v374
        %v376 = vrot.slane %v362, %v375
        %v377 = vcombine.high %v369, %v369
        %v378 = vcombine.high %v376, %v376
        %v380 = vunpack.c.l.s4 1966171168
        %v381 = vunpack.c.0.s8 %v380
        %v382 = vlaneseq
        %v383 = vshrl.u32 %v382, 7
        %v384 = vsub.s32 %v381, %v383
        %v385 = vrot.slane %v369, %v384
        %v387 = vunpack.c.l.s4 1966171168
        %v388 = vunpack.c.0.s8 %v387
        %v389 = vlaneseq
        %v390 = vshrl.u32 %v389, 7
        %v391 = vsub.s32 %v388, %v390
        %v392 = vrot.slane %v376, %v391
        %v394 = vunpack.c.l.s4 1966171168
        %v395 = vunpack.c.0.s8 %v394
        %v396 = vlaneseq
        %v397 = vshrl.u32 %v396, 7
        %v398 = vsub.s32 %v395, %v397
        %v399 = vrot.slane %v377, %v398
        %v401 = vunpack.c.l.s4 1966171168
        %v402 = vunpack.c.0.s8 %v401
        %v403 = vlaneseq
        %v404 = vshrl.u32 %v403, 7
        %v405 = vsub.s32 %v402, %v404
        %v406 = vrot.slane %v378, %v405
        %v407 = vcombine.high %v385, %v385
        %v408 = vcombine.high %v392, %v392
        %v409 = vcombine.high %v399, %v399
        %v410 = vcombine.high %v406, %v406
        %v411 = vcombine.high %v258, %v258
        %v413 = vunpack.c.l.s4 1966171168
        %v414 = vunpack.c.0.s8 %v413
        %v415 = vlaneseq
        %v416 = vshrl.u32 %v415, 7
        %v417 = vsub.s32 %v414, %v416
        %v418 = vrot.slane %v258, %v417
        %v420 = vunpack.c.l.s4 1966171168
        %v421 = vunpack.c.0.s8 %v420
        %v422 = vlaneseq
        %v423 = vshrl.u32 %v422, 7
        %v424 = vsub.s32 %v421, %v423
        %v425 = vrot.slane %v411, %v424
        %v426 = vcombine.high %v418, %v418
        %v427 = vcombine.high %v425, %v425
        %v429 = vunpack.c.l.s4 1966171168
        %v430 = vunpack.c.0.s8 %v429
        %v431 = vlaneseq
        %v432 = vshrl.u32 %v431, 7
        %v433 = vsub.s32 %v430, %v432
        %v434 = vrot.slane %v418, %v433
        %v436 = vunpack.c.l.s4 1966171168
        %v437 = vunpack.c.0.s8 %v436
        %v438 = vlaneseq
        %v439 = vshrl.u32 %v438, 7
        %v440 = vsub.s32 %v437, %v439
        %v441 = vrot.slane %v425, %v440
        %v443 = vunpack.c.l.s4 1966171168
        %v444 = vunpack.c.0.s8 %v443
        %v445 = vlaneseq
        %v446 = vshrl.u32 %v445, 7
        %v447 = vsub.s32 %v444, %v446
        %v448 = vrot.slane %v426, %v447
        %v450 = vunpack.c.l.s4 1966171168
        %v451 = vunpack.c.0.s8 %v450
        %v452 = vlaneseq
        %v453 = vshrl.u32 %v452, 7
        %v454 = vsub.s32 %v451, %v453
        %v455 = vrot.slane %v427, %v454
        %v456 = vcombine.high %v434, %v434
        %v457 = vcombine.high %v441, %v441
        %v458 = vcombine.high %v448, %v448
        %v459 = vcombine.high %v455, %v455
        %v460 = vlaneseq
        %v461 = vshrl.u32 %v460, 7
        %v462 = vsub.s32 0, %v461
        %v463 = vrot.slane %v287, %v462
        %v464 = vlaneseq
        %v465 = vshrl.u32 %v464, 7
        %v466 = vsub.s32 0, %v465
        %v467 = vrot.slane %v301, %v466
        %v468 = vlaneseq
        %v469 = vshrl.u32 %v468, 7
        %v470 = vsub.s32 0, %v469
        %v471 = vrot.slane %v309, %v470
        %v472 = vlaneseq
        %v473 = vshrl.u32 %v472, 7
        %v474 = vsub.s32 0, %v473
        %v475 = vrot.slane %v311, %v474
        %v476 = vlaneseq
        %v477 = vshrl.u32 %v476, 7
        %v478 = vsub.s32 0, %v477
        %v479 = vrot.slane %v294, %v478
        %v480 = vlaneseq
        %v481 = vshrl.u32 %v480, 7
        %v482 = vsub.s32 0, %v481
        %v483 = vrot.slane %v308, %v482
        %v484 = vlaneseq
        %v485 = vshrl.u32 %v484, 7
        %v486 = vsub.s32 0, %v485
        %v487 = vrot.slane %v310, %v486
        %v488 = vlaneseq
        %v489 = vshrl.u32 %v488, 7
        %v490 = vsub.s32 0, %v489
        %v491 = vrot.slane %v312, %v490
        %v492 = vlaneseq
        %v493 = vshrl.u32 %v492, 7
        %v494 = vsub.s32 0, %v493
        %v495 = vrot.slane %v336, %v494
        %v496 = vlaneseq
        %v497 = vshrl.u32 %v496, 7
        %v498 = vsub.s32 0, %v497
        %v499 = vrot.slane %v350, %v498
        %v500 = vlaneseq
        %v501 = vshrl.u32 %v500, 7
        %v502 = vsub.s32 0, %v501
        %v503 = vrot.slane %v358, %v502
        %v504 = vlaneseq
        %v505 = vshrl.u32 %v504, 7
        %v506 = vsub.s32 0, %v505
        %v507 = vrot.slane %v360, %v506
        %v508 = vlaneseq
        %v509 = vshrl.u32 %v508, 7
        %v510 = vsub.s32 0, %v509
        %v511 = vrot.slane %v343, %v510
        %v512 = vlaneseq
        %v513 = vshrl.u32 %v512, 7
        %v514 = vsub.s32 0, %v513
        %v515 = vrot.slane %v357, %v514
        %v516 = vlaneseq
        %v517 = vshrl.u32 %v516, 7
        %v518 = vsub.s32 0, %v517
        %v519 = vrot.slane %v359, %v518
        %v520 = vlaneseq
        %v521 = vshrl.u32 %v520, 7
        %v522 = vsub.s32 0, %v521
        %v523 = vrot.slane %v361, %v522
        %v524 = vlaneseq
        %v525 = vshrl.u32 %v524, 7
        %v526 = vsub.s32 0, %v525
        %v527 = vrot.slane %v385, %v526
        %v528 = vlaneseq
        %v529 = vshrl.u32 %v528, 7
        %v530 = vsub.s32 0, %v529
        %v531 = vrot.slane %v399, %v530
        %v532 = vlaneseq
        %v533 = vshrl.u32 %v532, 7
        %v534 = vsub.s32 0, %v533
        %v535 = vrot.slane %v407, %v534
        %v536 = vlaneseq
        %v537 = vshrl.u32 %v536, 7
        %v538 = vsub.s32 0, %v537
        %v539 = vrot.slane %v409, %v538
        %v540 = vlaneseq
        %v541 = vshrl.u32 %v540, 7
        %v542 = vsub.s32 0, %v541
        %v543 = vrot.slane %v392, %v542
        %v544 = vlaneseq
        %v545 = vshrl.u32 %v544, 7
        %v546 = vsub.s32 0, %v545
        %v547 = vrot.slane %v406, %v546
        %v548 = vlaneseq
        %v549 = vshrl.u32 %v548, 7
        %v550 = vsub.s32 0, %v549
        %v551 = vrot.slane %v408, %v550
        %v552 = vlaneseq
        %v553 = vshrl.u32 %v552, 7
        %v554 = vsub.s32 0, %v553
        %v555 = vrot.slane %v410, %v554
        %v556 = vlaneseq
        %v557 = vshrl.u32 %v556, 7
        %v558 = vsub.s32 0, %v557
        %v559 = vrot.slane %v434, %v558
        %v560 = vlaneseq
        %v561 = vshrl.u32 %v560, 7
        %v562 = vsub.s32 0, %v561
        %v563 = vrot.slane %v448, %v562
        %v564 = vlaneseq
        %v565 = vshrl.u32 %v564, 7
        %v566 = vsub.s32 0, %v565
        %v567 = vrot.slane %v456, %v566
        %v568 = vlaneseq
        %v569 = vshrl.u32 %v568, 7
        %v570 = vsub.s32 0, %v569
        %v571 = vrot.slane %v458, %v570
        %v572 = vlaneseq
        %v573 = vshrl.u32 %v572, 7
        %v574 = vsub.s32 0, %v573
        %v575 = vrot.slane %v441, %v574
        %v576 = vlaneseq
        %v577 = vshrl.u32 %v576, 7
        %v578 = vsub.s32 0, %v577
        %v579 = vrot.slane %v455, %v578
        %v580 = vlaneseq
        %v581 = vshrl.u32 %v580, 7
        %v582 = vsub.s32 0, %v581
        %v583 = vrot.slane %v457, %v582
        %v584 = vlaneseq
        %v585 = vshrl.u32 %v584, 7
        %v586 = vsub.s32 0, %v585
        %v587 = vrot.slane %v459, %v586
        %v620 = vadd.f32 %v463, %v259
        %v621 = vadd.f32 %v467, %v259
        %v622 = vadd.f32 %v471, %v259
        %v623 = vadd.f32 %v475, %v259
        %v624 = vadd.f32 %v479, %v259
        %v625 = vadd.f32 %v483, %v259
        %v626 = vadd.f32 %v487, %v259
        %v627 = vadd.f32 %v491, %v259
        %v628 = vadd.f32 %v495, %v259
        %v629 = vadd.f32 %v499, %v259
        %v630 = vadd.f32 %v503, %v259
        %v631 = vadd.f32 %v507, %v259
        %v632 = vadd.f32 %v511, %v259
        %v633 = vadd.f32 %v515, %v259
        %v634 = vadd.f32 %v519, %v259
        %v635 = vadd.f32 %v523, %v259
        %v636 = vadd.f32 %v527, %v259
        %v637 = vadd.f32 %v531, %v259
        %v638 = vadd.f32 %v535, %v259
        %v639 = vadd.f32 %v539, %v259
        %v640 = vadd.f32 %v543, %v259
        %v641 = vadd.f32 %v547, %v259
        %v642 = vadd.f32 %v551, %v259
        %v643 = vadd.f32 %v555, %v259
        %v644 = vadd.f32 %v559, %v259
        %v645 = vadd.f32 %v563, %v259
        %v646 = vadd.f32 %v567, %v259
        %v647 = vadd.f32 %v571, %v259
        %v648 = vadd.f32 %v575, %v259
        %v649 = vadd.f32 %v579, %v259
        %v650 = vadd.f32 %v583, %v259
        %v651 = vadd.f32 %v587, %v259
        %652 = vxpose.xlu0.b32.start [1/16] %v620, 128
        %653 = vxpose.xlu0.b32.cont [2/16] %v621, 128
        %654 = vxpose.xlu0.b32.cont [3/16] %v622, 128
        %655 = vxpose.xlu0.b32.cont [4/16] %v623, 128
        %656 = vxpose.xlu0.b32.cont [5/16] %v624, 128
        %657 = vxpose.xlu0.b32.cont [6/16] %v625, 128
        %658 = vxpose.xlu0.b32.cont [7/16] %v626, 128
        %659 = vxpose.xlu0.b32.cont [8/16] %v627, 128
        %660 = vxpose.xlu0.b32.cont [9/16] %v628, 128
        %661 = vxpose.xlu0.b32.cont [10/16] %v629, 128
        %662 = vxpose.xlu0.b32.cont [11/16] %v630, 128
        %663 = vxpose.xlu0.b32.cont [12/16] %v631, 128
        %664 = vxpose.xlu0.b32.cont [13/16] %v632, 128
        %665 = vxpose.xlu0.b32.cont [14/16] %v633, 128
        %666 = vxpose.xlu0.b32.cont [15/16] %v634, 128
        %667 = vxpose.xlu0.b32.end [16/16] %v635, 128
        %v668 = vpop.trf.xlu0
        %v669 = vpop.trf.xlu0
        %v670 = vpop.trf.xlu0
        %v671 = vpop.trf.xlu0
        %v672 = vpop.trf.xlu0
        %v673 = vpop.trf.xlu0
        %v674 = vpop.trf.xlu0
        %v675 = vpop.trf.xlu0
        %v676 = vpop.trf.xlu0
        %v677 = vpop.trf.xlu0
        %v678 = vpop.trf.xlu0
        %v679 = vpop.trf.xlu0
        %v680 = vpop.trf.xlu0
        %v681 = vpop.trf.xlu0
        %v682 = vpop.trf.xlu0
        %v683 = vpop.trf.xlu0
        %684 = vxpose.xlu0.b32.start [1/16] %v636, 128
        %685 = vxpose.xlu0.b32.cont [2/16] %v637, 128
        %686 = vxpose.xlu0.b32.cont [3/16] %v638, 128
        %687 = vxpose.xlu0.b32.cont [4/16] %v639, 128
        %688 = vxpose.xlu0.b32.cont [5/16] %v640, 128
        %689 = vxpose.xlu0.b32.cont [6/16] %v641, 128
        %690 = vxpose.xlu0.b32.cont [7/16] %v642, 128
        %691 = vxpose.xlu0.b32.cont [8/16] %v643, 128
        %692 = vxpose.xlu0.b32.cont [9/16] %v644, 128
        %693 = vxpose.xlu0.b32.cont [10/16] %v645, 128
        %694 = vxpose.xlu0.b32.cont [11/16] %v646, 128
        %695 = vxpose.xlu0.b32.cont [12/16] %v647, 128
        %696 = vxpose.xlu0.b32.cont [13/16] %v648, 128
        %697 = vxpose.xlu0.b32.cont [14/16] %v649, 128
        %698 = vxpose.xlu0.b32.cont [15/16] %v650, 128
        %699 = vxpose.xlu0.b32.end [16/16] %v651, 128
        %v700 = vpop.trf.xlu0
        %v701 = vpop.trf.xlu0
        %v702 = vpop.trf.xlu0
        %v703 = vpop.trf.xlu0
        %v704 = vpop.trf.xlu0
        %v705 = vpop.trf.xlu0
        %v706 = vpop.trf.xlu0
        %v707 = vpop.trf.xlu0
        %v708 = vpop.trf.xlu0
        %v709 = vpop.trf.xlu0
        %v710 = vpop.trf.xlu0
        %v711 = vpop.trf.xlu0
        %v712 = vpop.trf.xlu0
        %v713 = vpop.trf.xlu0
        %v714 = vpop.trf.xlu0
        %v715 = vpop.trf.xlu0
        %v716 = vpack.c.bf16 %v669, %v668
        %v717 = vpack.c.bf16 %v701, %v700
        %v718 = vpack.c.bf16 %v671, %v670
        %v719 = vpack.c.bf16 %v703, %v702
        %vm720 = vcmp.gt.bf16.partialorder %v716, 0
        %vm721 = vcmp.gt.bf16.partialorder %v717, 0
        %vm722 = vcmp.gt.bf16.partialorder %v718, 0
        %vm723 = vcmp.gt.bf16.partialorder %v719, 0
        %v724 = vmin.bf16 %v716, 0
        %v725 = vmin.bf16 %v717, 0
        %v726 = vmin.bf16 %v718, 0
        %v727 = vmin.bf16 %v719, 0
        %v729 = vmul.bf16 %v724, 1069105081
        %v730 = vpow.bf16.pop %v729
        %v732 = vmul.bf16 %v725, 1069105081
        %v733 = vpow.bf16.pop %v732
        %v735 = vmul.bf16 %v726, 1069105081
        %v736 = vpow.bf16.pop %v735
        %v738 = vmul.bf16 %v727, 1069105081
        %v739 = vpow.bf16.pop %v738
        %v740 = vsub.bf16 %v730, 1065369472
        %v741 = vsub.bf16 %v733, 1065369472
        %v742 = vsub.bf16 %v736, 1065369472
        %v743 = vsub.bf16 %v739, 1065369472
        %v744 = vsel %vm720, %v716, %v740
        %v745 = vsel %vm721, %v717, %v741
        %v746 = vsel %vm722, %v718, %v742
        %v747 = vsel %vm723, %v719, %v743
        %v748 = vld [vmem:[%s2] sm:$0xf]
        %v749 = vld [vmem:[%s2 + $0x4] sm:$0xf]
        %v750 = vld [vmem:[%s2 + $0x8] sm:$0xf]
        %v751 = vld [vmem:[%s2 + $0xc] sm:$0xf]
        %v752 = vld [vmem:[%s3] sm:$0xff]
        %v753 = vld [vmem:[%s3 + $0x8] sm:$0xff]
        %v754 = vld [vmem:[%s3 + $0x10] sm:$0xff]
        %v755 = vld [vmem:[%s3 + $0x18] sm:$0xff]
        %757 = vset.pattern.permute.xlu0 0
        %758 = vperm.xlu0 %757, %v752
        %v759 = vpop.permute.xlu0 %758
        %762 = vset.pattern.permute.xlu0 0
        %763 = vperm.xlu0 %762, %v753
        %v764 = vpop.permute.xlu0 %763
        %767 = vset.pattern.permute.xlu0 0
        %768 = vperm.xlu0 %767, %v754
        %v769 = vpop.permute.xlu0 %768
        %772 = vset.pattern.permute.xlu0 0
        %773 = vperm.xlu0 %772, %v755
        %v774 = vpop.permute.xlu0 %773
        %v780 = vunpack.c.l.b16 %v748
        %v781 = vunpack.c.l.b16 %v749
        %v782 = vunpack.c.l.b16 %v750
        %v783 = vunpack.c.l.b16 %v751
        %v784 = vpack.c.b16 %v781, %v780
        %v785 = vpack.c.b16 %v783, %v782
        %vm786 = vcmask 261120
        %v788 = vsel %vm786, %v784, 0
        %v791 = vsel %vm786, %v785, 0
        %793 = vmatprep.subr.bf16.mxu0 %v745
        %794 = vmatpush1.bf16.msra.mxu0 %v744
        %795 = vmatprep.subr.bf16.mxu0 %v747
        %796 = vmatpush1.bf16.msra.mxu0 %v746
        %797 = vmatprep.subr.bf16.mxu0 0
        %798 = vmatpush1.bf16.msra.mxu0 0
        %799 = vmatprep.subr.bf16.mxu0 0
        %800 = vmatpush1.bf16.msra.mxu0 0
        %801 = vmatprep.subr.bf16.mxu0 0
        %802 = vmatpush1.bf16.msra.mxu0 0
        %803 = vmatprep.subr.bf16.mxu0 0
        %804 = vmatpush1.bf16.msra.mxu0 0
        %805 = vmatprep.subr.bf16.mxu0 0
        %806 = vmatpush1.bf16.msra.mxu0 0
        %807 = vmatprep.subr.bf16.mxu0 0
        %808 = vmatpush1.bf16.msra.mxu0 0
        %809 = vmatprep.subr.bf16.mxu0 0
        %810 = vmatpush1.bf16.msra.mxu0 0
        %811 = vmatprep.subr.bf16.mxu0 0
        %812 = vmatpush1.bf16.msra.mxu0 0
        %813 = vmatprep.subr.bf16.mxu0 0
        %814 = vmatpush1.bf16.msra.mxu0 0
        %815 = vmatprep.subr.bf16.mxu0 0
        %816 = vmatpush1.bf16.msra.mxu0 0
        %817 = vmatprep.subr.bf16.mxu0 0
        %818 = vmatpush1.bf16.msra.mxu0 0
        %819 = vmatprep.subr.bf16.mxu0 0
        %820 = vmatpush1.bf16.msra.mxu0 0
        %821 = vmatprep.subr.bf16.mxu0 0
        %822 = vmatpush1.bf16.msra.mxu0 0
        %823 = vmatprep.subr.bf16.mxu0 0
        %824 = vmatpush1.bf16.msra.mxu0 0
        %825 = vmatprep.mubr.bf16.mxu0 0
        %826 = vmatmul.mubr.bf16.gmra.mrb[0].mxu0 %v788
        %v827 = vpop.f32.mrb[0].mxu0
        %v828 = vadd.f32 %v759, %v827
        %v829 = vpop.f32.mrb[0].mxu0
        %v830 = vadd.f32 %v759, %v829
        %v831 = vpop.f32.mrb[0].mxu0
        %v832 = vadd.f32 %v764, %v831
        %v833 = vpop.f32.mrb[0].mxu0
        %v834 = vadd.f32 %v764, %v833
        %835 = vmatprep.mubr.bf16.mxu0 0
        %836 = vmatmul.mubr.bf16.gmra.mrb[0].mxu0 %v791
        %v837 = vpop.f32.mrb[0].mxu0
        %v838 = vadd.f32 %v769, %v837
        %v839 = vpop.f32.mrb[0].mxu0
        %v840 = vadd.f32 %v769, %v839
        %v841 = vpop.f32.mrb[0].mxu0
        %v842 = vadd.f32 %v774, %v841
        %v843 = vpop.f32.mrb[0].mxu0
        %v844 = vadd.f32 %v774, %v843
        %845 = vdwg.mxu0
        %v846 = vlaneseq
        %v847 = vshrl.u32 %v846, 7
        %v848 = vadd.s32 %v847, 8
        %v849 = vadd.s32 %v847, 16
        %v850 = vadd.s32 %v847, 24
        %vm851 = vcmp.lt.s32.totalorder %v847, 8
        %vm852 = vcmp.lt.s32.totalorder %v848, 8
        %vm853 = vcmp.lt.s32.totalorder %v849, 8
        %vm854 = vcmp.lt.s32.totalorder %v850, 8
        %vm855 = vcmp.ge.s32.totalorder %v847, 8
        %vm856 = vcmp.ge.s32.totalorder %v848, 8
        %vm857 = vcmp.ge.s32.totalorder %v849, 8
        %vm858 = vcmp.ge.s32.totalorder %v850, 8
        %vm859 = vcmp.lt.s32.totalorder %v847, 16
        %vm860 = vcmp.lt.s32.totalorder %v848, 16
        %vm861 = vcmp.lt.s32.totalorder %v849, 16
        %vm862 = vcmp.lt.s32.totalorder %v850, 16
        %vm863 = vmand %vm855, %vm859
        %vm864 = vmand %vm856, %vm860
        %vm865 = vmand %vm857, %vm861
        %vm866 = vmand %vm858, %vm862
        %vm867 = vcmp.ge.s32.totalorder %v847, 16
        %vm868 = vcmp.ge.s32.totalorder %v848, 16
        %vm869 = vcmp.ge.s32.totalorder %v849, 16
        %vm870 = vcmp.ge.s32.totalorder %v850, 16
        %vm871 = vcmp.lt.s32.totalorder %v847, 24
        %vm872 = vcmp.lt.s32.totalorder %v848, 24
        %vm873 = vcmp.lt.s32.totalorder %v849, 24
        %vm874 = vcmp.lt.s32.totalorder %v850, 24
        %vm875 = vmand %vm867, %vm871
        %vm876 = vmand %vm868, %vm872
        %vm877 = vmand %vm869, %vm873
        %vm878 = vmand %vm870, %vm874
        %vm879 = vcmp.eq.s32.totalorder %v847, 24
        %vm880 = vcmp.eq.s32.totalorder %v848, 24
        %vm881 = vcmp.eq.s32.totalorder %v849, 24
        %vm882 = vcmp.eq.s32.totalorder %v850, 24
        %v883 = vsel %vm851, %v828, -inf
        %v884 = vsel %vm851, %v830, -inf
        %v885 = vsel %vm852, %v832, -inf
        %v886 = vsel %vm852, %v834, -inf
        %v887 = vsel %vm853, %v838, -inf
        %v888 = vsel %vm853, %v840, -inf
        %v889 = vsel %vm854, %v842, -inf
        %v890 = vsel %vm854, %v844, -inf
        %v891 = vmax.f32 %v883, %v887
        %v892 = vmax.f32 %v885, %v889
        %v893 = vmax.f32 %v891, %v892
        %v894 = vrot.slane %v893, 4
        %v895 = vmax.f32 %v893, %v894
        %v896 = vrot.slane %v895, 2
        %v897 = vmax.f32 %v895, %v896
        %v898 = vrot.slane %v897, 1
        %v899 = vmax.f32 %v897, %v898
        %v900 = vmax.f32 %v884, %v888
        %v901 = vmax.f32 %v886, %v890
        %v902 = vmax.f32 %v900, %v901
        %v903 = vrot.slane %v902, 4
        %v904 = vmax.f32 %v902, %v903
        %v905 = vrot.slane %v904, 2
        %v906 = vmax.f32 %v904, %v905
        %v907 = vrot.slane %v906, 1
        %v908 = vmax.f32 %v906, %v907
        %v909 = vsub.f32 %v828, %v899
        %v910 = vsub.f32 %v830, %v908
        %v911 = vsub.f32 %v832, %v899
        %v912 = vsub.f32 %v834, %v908
        %v913 = vsub.f32 %v838, %v899
        %v914 = vsub.f32 %v840, %v908
        %v915 = vsub.f32 %v842, %v899
        %v916 = vsub.f32 %v844, %v908
        %v917 = vmin.f32 %v828, 0.0
        %v918 = vmin.f32 %v830, 0.0
        %v919 = vmin.f32 %v832, 0.0
        %v920 = vmin.f32 %v834, 0.0
        %v921 = vmin.f32 %v838, 0.0
        %v922 = vmin.f32 %v840, 0.0
        %v923 = vmin.f32 %v842, 0.0
        %v924 = vmin.f32 %v844, 0.0
        %v925 = vsel %vm851, %v909, %v917
        %v926 = vsel %vm851, %v910, %v918
        %v927 = vsel %vm852, %v911, %v919
        %v928 = vsel %vm852, %v912, %v920
        %v929 = vsel %vm853, %v913, %v921
        %v930 = vsel %vm853, %v914, %v922
        %v931 = vsel %vm854, %v915, %v923
        %v932 = vsel %vm854, %v916, %v924
        %v933 = vmul.f32 %v925, 1.442695
        %v934 = vpow.pop %v933
        %v935 = vmul.f32 %v926, 1.442695
        %v936 = vpow.pop %v935
        %v937 = vmul.f32 %v927, 1.442695
        %v938 = vpow.pop %v937
        %v939 = vmul.f32 %v928, 1.442695
        %v940 = vpow.pop %v939
        %v941 = vmul.f32 %v929, 1.442695
        %v942 = vpow.pop %v941
        %v943 = vmul.f32 %v930, 1.442695
        %v944 = vpow.pop %v943
        %v945 = vmul.f32 %v931, 1.442695
        %v946 = vpow.pop %v945
        %v947 = vmul.f32 %v932, 1.442695
        %v948 = vpow.pop %v947
        %v949 = vsel %vm851, %v934, 0.0
        %v950 = vsel %vm851, %v936, 0.0
        %v951 = vsel %vm852, %v938, 0.0
        %v952 = vsel %vm852, %v940, 0.0
        %v953 = vsel %vm853, %v942, 0.0
        %v954 = vsel %vm853, %v944, 0.0
        %v955 = vsel %vm854, %v946, 0.0
        %v956 = vsel %vm854, %v948, 0.0
        %v957 = vadd.f32 %v949, %v951
        %v958 = vadd.f32 %v957, %v953
        %v959 = vadd.f32 %v958, %v955
        %v960 = vrot.slane %v959, 4
        %v961 = vadd.f32 %v959, %v960
        %v962 = vrot.slane %v961, 2
        %v963 = vadd.f32 %v961, %v962
        %v964 = vrot.slane %v963, 1
        %v965 = vadd.f32 %v963, %v964
        %v966 = vadd.f32 %v950, %v952
        %v967 = vadd.f32 %v966, %v954
        %v968 = vadd.f32 %v967, %v956
        %v969 = vrot.slane %v968, 4
        %v970 = vadd.f32 %v968, %v969
        %v971 = vrot.slane %v970, 2
        %v972 = vadd.f32 %v970, %v971
        %v973 = vrot.slane %v972, 1
        %v974 = vadd.f32 %v972, %v973
        %v975 = vrcp.pop %v965
        %v976 = vrcp.pop %v974
        %v977 = vmul.f32 %v949, %v975
        %v978 = vmul.f32 %v950, %v976
        %v979 = vmul.f32 %v951, %v975
        %v980 = vmul.f32 %v952, %v976
        %v981 = vmul.f32 %v953, %v975
        %v982 = vmul.f32 %v954, %v976
        %v983 = vmul.f32 %v955, %v975
        %v984 = vmul.f32 %v956, %v976
        %vm985 = vcmp.gt.f32.partialorder %v828, 0.0
        %vm986 = vcmp.gt.f32.partialorder %v830, 0.0
        %vm987 = vcmp.gt.f32.partialorder %v832, 0.0
        %vm988 = vcmp.gt.f32.partialorder %v834, 0.0
        %vm989 = vcmp.gt.f32.partialorder %v838, 0.0
        %vm990 = vcmp.gt.f32.partialorder %v840, 0.0
        %vm991 = vcmp.gt.f32.partialorder %v842, 0.0
        %vm992 = vcmp.gt.f32.partialorder %v844, 0.0
        %v993 = vsub.f32 %v934, 1.0
        %v994 = vsub.f32 %v936, 1.0
        %v995 = vsub.f32 %v938, 1.0
        %v996 = vsub.f32 %v940, 1.0
        %v997 = vsub.f32 %v942, 1.0
        %v998 = vsub.f32 %v944, 1.0
        %v999 = vsub.f32 %v946, 1.0
        %v1000 = vsub.f32 %v948, 1.0
        %v1001 = vsel %vm985, %v828, %v993
        %v1002 = vsel %vm986, %v830, %v994
        %v1003 = vsel %vm987, %v832, %v995
        %v1004 = vsel %vm988, %v834, %v996
        %v1005 = vsel %vm989, %v838, %v997
        %v1006 = vsel %vm990, %v840, %v998
        %v1007 = vsel %vm991, %v842, %v999
        %v1008 = vsel %vm992, %v844, %v1000
        %v1009 = vsel %vm875, 1.0, 0.0
        %v1010 = vsel %vm876, 1.0, 0.0
        %v1011 = vsel %vm877, 1.0, 0.0
        %v1012 = vsel %vm878, 1.0, 0.0
        %v1013 = vsel %vm863, 1.1, %v1009
        %v1014 = vsel %vm864, 1.1, %v1010
        %v1015 = vsel %vm865, 1.1, %v1011
        %v1016 = vsel %vm866, 1.1, %v1012
        %v1017 = vadd.f32 %v1001, %v1013
        %v1018 = vadd.f32 %v1002, %v1013
        %v1019 = vadd.f32 %v1003, %v1014
        %v1020 = vadd.f32 %v1004, %v1014
        %v1021 = vadd.f32 %v1005, %v1015
        %v1022 = vadd.f32 %v1006, %v1015
        %v1023 = vadd.f32 %v1007, %v1016
        %v1024 = vadd.f32 %v1008, %v1016
        %v1025 = vsel %vm851, %v977, %v1017
        %v1026 = vsel %vm851, %v978, %v1018
        %v1027 = vsel %vm852, %v979, %v1019
        %v1028 = vsel %vm852, %v980, %v1020
        %v1029 = vsel %vm853, %v981, %v1021
        %v1030 = vsel %vm853, %v982, %v1022
        %v1031 = vsel %vm854, %v983, %v1023
        %v1032 = vsel %vm854, %v984, %v1024
        %v1033 = vmul.f32 %v672, %v673
        %v1034 = vmul.f32 %v704, %v705
        %v1035 = vrot.slane %v1033, 4
        %v1036 = vadd.f32 %v1033, %v1035
        %v1037 = vrot.slane %v1036, 2
        %v1038 = vadd.f32 %v1036, %v1037
        %v1039 = vrot.slane %v1038, 1
        %v1040 = vadd.f32 %v1038, %v1039
        %v1041 = vrot.slane %v1034, 4
        %v1042 = vadd.f32 %v1034, %v1041
        %v1043 = vrot.slane %v1042, 2
        %v1044 = vadd.f32 %v1042, %v1043
        %v1045 = vrot.slane %v1044, 1
        %v1046 = vadd.f32 %v1044, %v1045
        %v1047 = vmax.f32 %v1040, 0.0
        %v1048 = vmax.f32 %v1046, 0.0
        %v1049 = vrsqrt.pop %v1047
        %v1050 = vmul.f32 %v1047, %v1049
        %vm1051 = vcmp.eq.f32.partialorder %v1047, inf
        %v1052 = vsel %vm1051, %v1047, %v1050
        %vm1053 = vcmp.eq.f32.partialorder %v1047, 0.0
        %v1054 = vand.u32 %v1047, 2147483648
        %v1055 = vsel %vm1053, %v1054, %v1052
        %v1056 = vrsqrt.pop %v1048
        %v1057 = vmul.f32 %v1048, %v1056
        %vm1058 = vcmp.eq.f32.partialorder %v1048, inf
        %v1059 = vsel %vm1058, %v1048, %v1057
        %vm1060 = vcmp.eq.f32.partialorder %v1048, 0.0
        %v1061 = vand.u32 %v1048, 2147483648
        %v1062 = vsel %vm1060, %v1061, %v1059
        %v1063 = vsel %vm879, %v1055, %v1025
        %v1064 = vsel %vm879, %v1062, %v1026
        %v1065 = vsel %vm880, %v1055, %v1027
        %v1066 = vsel %vm880, %v1062, %v1028
        %v1067 = vsel %vm881, %v1055, %v1029
        %v1068 = vsel %vm881, %v1062, %v1030
        %v1069 = vsel %vm882, %v1055, %v1031
        %v1070 = vsel %vm882, %v1062, %v1032
        %v1071 = vpack.c.bf16 %v1065, %v1063
        %v1072 = vpack.c.bf16 %v1066, %v1064
        %v1073 = vpack.c.bf16 %v1069, %v1067
        %v1074 = vpack.c.bf16 %v1070, %v1068
        %v1079 = vunpack.c.l.b16 %v1071
        %v1080 = vunpack.c.l.b16 %v1072
        %v1081 = vunpack.c.h.b16 %v1071
        %v1082 = vunpack.c.h.b16 %v1072
        %v1083 = vunpack.c.l.b16 %v1073
        %v1084 = vunpack.c.l.b16 %v1074
        %v1085 = vunpack.c.h.b16 %v1073
        %v1086 = vunpack.c.h.b16 %v1074
        %v1087 = vpack.c.b16 %v1080, %v1079
        %v1088 = vpack.c.b16 %v1082, %v1081
        %v1089 = vpack.c.b16 %v1084, %v1083
        %v1090 = vpack.c.b16 %v1086, %v1085
        %1095 = vst [vmem:[%s246] sm:$0xff] %v1087
        %1096 = vst [vmem:[%s246 + $0x8] sm:$0xff] %v1088
        %1097 = vst [vmem:[%s246 + $0x10] sm:$0xff] %v1089
        %1098 = vst [vmem:[%s246 + $0x18] sm:$0xff] %v1090
        %s1099 = sand.u32 %s139, 1
        %s1100 = scalar_lea.sflag [#allocation4], %s1099
        %s1101 = sand.u32 %s139, 1
        %s1102 = smul.addr %s1101, 32
        %s1103 = scalar_lea.vmem [#allocation5], %s1102
        // Predicated region
        $region41: #{tpu_custom_call.1} parent=35 // pred_check
          %p1104 = pneg %p149
        $region42: #{tpu_custom_call.1} parent=35 // pred_check_branch
          %1106 = sbr.rel (%p1104) target = $region44
        $region43: #{tpu_custom_call.1} parent=35 // pred_region
          %s1107 = smul.u32 2, %s26
          %s1109 = ssub.s32 512, 512
          %1110 = vsyncadd %s1100, %s1109
          %s1111 = smul.addr %s25, 8
          %s1112 = sadd.s32 %s1107, %s1111
          %s1113 = smul.addr %s1112, 64
          %s1114 = scalar_lea.hbm %s4, %s1113
          %s1115 = sshll.u32 %s1103, 4
          %s1116 = int_to_ptr.vmem [resolvable:$true] %s1115
          %1121 = dma.vmem_to_hbm [thread:$0]  %s1116, 512, %s1114, %s1100, 128, 128, 8
        $region44: #{tpu_custom_call.1} parent=35 // pred_fallthru
          _
      $region36: #{tpu_custom_call.1} parent=5 // pred_fallthru
        _
      %p1122 = scmp.le.s32.totalorder 2, %s16
      // Predicated region
      $region45: #{tpu_custom_call.1} parent=5 // pred_check
        %p1123 = pneg %p1122
      $region46: #{tpu_custom_call.1} parent=5 // pred_check_branch
        %1125 = sbr.rel (%p1123) target = $region48
      $region47: #{tpu_custom_call.1} parent=5 // pred_region
        %s1126 = ssub.s32 %s16, 2
        // Predicated region
        $region49: #{tpu_custom_call.1} parent=47 // pred_check
          %p1127 = pneg %p155
        $region50: #{tpu_custom_call.1} parent=47 // pred_check_branch
          %1129 = sbr.rel (%p1127) target = $region52
        $region51: #{tpu_custom_call.1} parent=47 // pred_region
          %s1130 = sand.u32 %s140, 1
          %s1131 = scalar_lea.sflag [#allocation4], %s1130
          %s1132 = sand.u32 %s140, 1
          %s1133 = smul.addr %s1132, 32
          %s1134 = scalar_lea.vmem [#allocation5], %s1133
          %1135 = dma.done %s1131, 512
        $region52: #{tpu_custom_call.1} parent=47 // pred_fallthru
          _
      $region48: #{tpu_custom_call.1} parent=5 // pred_fallthru
        _
    $region6: #{tpu_custom_call.1} parent=1 // loop_footer
      %s20 = sadd.s32 1, %s16
    $region7: #{tpu_custom_call.1} parent=1 // loop_footer_branch
      %15 = sbr.rel target = $region3
    $region8: #{tpu_custom_call.1} parent=1 // loop_exit
      _
    %1136 = vsyncpa [#allocation3], 1
    %s1137 = scalar_lea.sflag [#allocation3], 1
    %1138 = vsyncpa %s1137, 1
    %1139 = vsyncpa [#allocation4], 1
    %s1140 = scalar_lea.sflag [#allocation4], 1
    %1141 = vsyncpa %s1140, 1

</llo_original>
